<compile_context>
chip_gen: v7x
topology: tpu7x:2x2x1
jax: 0.10.0
libtpu: 0.0.40
codegen_flags: <defaults>
</compile_context>

<pallas_src>
import functools

import jax
import jax.numpy as jnp
from jax.experimental import pallas as pl
from jax.experimental.pallas import tpu as pltpu


def _adapter_kernel(x_ref, wd_ref, bd_ref, wu_ref, bu_ref, o_ref, *, add_residual):
    # x_ref:  (tm, H)   input rows tile (streamed, double-buffered)
    # wd_ref: (H,  B)   down-projection weight (in, out), compute dtype
    # bd_ref: (1,  B)   down-projection bias
    # wu_ref: (B,  H)   up-projection weight (in, out), compute dtype
    # bu_ref: (1,  H)   up-projection bias
    h = jnp.dot(x_ref[...].astype(wd_ref.dtype), wd_ref[...],
                preferred_element_type=jnp.float32)
    h = h + bd_ref[...].astype(jnp.float32)
    h = jnp.maximum(h, 0.0)                       # ReLU, f32 epilogue
    y = jnp.dot(h.astype(wu_ref.dtype), wu_ref[...],
                preferred_element_type=jnp.float32)
    y = y + bu_ref[...].astype(jnp.float32)
    if add_residual:
        # Residual add done by CanineLayerWithAdapter around the adapter.
        # Re-read the tile (still resident in VMEM) instead of keeping the
        # value loaded before the first dot live across both matmuls.
        y = y + x_ref[...].astype(jnp.float32)
    o_ref[...] = y.astype(o_ref.dtype)


def _round_up(n, m):
    return (n + m - 1) // m * m


def adapter_forward(x, w_down, b_down, w_up, b_up, *, tm=None,
                    add_residual=False, compute_dtype=jnp.bfloat16,
                    out_dtype=None):
    """Fused adapter: out = [x +] up_proj(relu(down_proj(x))).

    x: (batch, seq, hidden); w_down: (hidden, bottleneck); w_up: (bottleneck, hidden).
    Activations are streamed in x.dtype (pass bf16 to halve HBM traffic);
    weights / matmul operands use `compute_dtype`, accumulation is f32.
    """
    batch, seq, hidden = x.shape
    bottleneck = w_down.shape[1]
    assert w_down.shape == (hidden, bottleneck)
    assert w_up.shape == (bottleneck, hidden)
    if out_dtype is None:
        out_dtype = x.dtype

    M = batch * seq
    x2 = x.reshape(M, hidden)

    # Weights are small and grid-invariant: cast them to the MXU compute dtype.
    # The activation stream is NOT cast in the wrapper (that would cost an
    # extra full HBM pass); the kernel casts each resident tile on-chip.
    wd = w_down.astype(compute_dtype)
    wu = w_up.astype(compute_dtype)
    bd = b_down.reshape(1, bottleneck)
    bu = b_up.reshape(1, hidden)

    # Row tile: multiple of 8 sublanes.  Aim for >= ~8 grid steps (v7x megacore
    # + pipeline overlap) but cap at 1024 rows so 2x in + 2x out buffers plus
    # single-buffered weights stay well under the scoped VMEM limit on every
    # generation (f32 worst case ~15 MiB at hidden=768, tm=1024).
    if tm is None:
        target_steps = 8
        tm = max(8, min(1024, _round_up(pl.cdiv(M, target_steps), 8)))
    tm = min(_round_up(tm, 8), _round_up(M, 8))
    grid = (pl.cdiv(M, tm),)   # ragged last tile handled by Pallas boundary blocks

    # Grid-invariant weights / biases: single-buffered so they don't pay 2x
    # VMEM like the pipelined x / output tiles.
    single = pl.Buffered(1)

    in_bytes = jnp.dtype(x.dtype).itemsize
    out_bytes = jnp.dtype(out_dtype).itemsize
    w_bytes = jnp.dtype(compute_dtype).itemsize
    cost = pl.CostEstimate(
        flops=4 * M * hidden * bottleneck
              + (3 if add_residual else 2) * M * hidden
              + 2 * M * bottleneck,
        transcendentals=0,
        bytes_accessed=M * hidden * (in_bytes + out_bytes)
                       + 2 * hidden * bottleneck * w_bytes
                       + (hidden + bottleneck) * 4,
    )

    out = pl.pallas_call(
        functools.partial(_adapter_kernel, add_residual=add_residual),
        out_shape=jax.ShapeDtypeStruct((M, hidden), out_dtype),
        grid_spec=pltpu.PrefetchScalarGridSpec(
            num_scalar_prefetch=0,
            grid=grid,
            in_specs=[
                pl.BlockSpec((tm, hidden), lambda i: (i, 0)),                   # x tile
                pl.BlockSpec((hidden, bottleneck), lambda i: (0, 0),
                             pipeline_mode=single),                             # W_down
                pl.BlockSpec((1, bottleneck), lambda i: (0, 0),
                             pipeline_mode=single),                             # b_down
                pl.BlockSpec((bottleneck, hidden), lambda i: (0, 0),
                             pipeline_mode=single),                             # W_up
                pl.BlockSpec((1, hidden), lambda i: (0, 0),
                             pipeline_mode=single),                             # b_up
            ],
            out_specs=pl.BlockSpec((tm, hidden), lambda i: (i, 0)),
        ),
        compiler_params=pltpu.CompilerParams(
            dimension_semantics=("parallel",),      # megacore sharding on v7x
            vmem_limit_bytes=48 * 1024 * 1024,      # headroom over v5e's 16 MiB
        ),                                          # default; fits v7x's 64 MiB
        cost_estimate=cost,
    )(x2, wd, bd, wu, bu)

    return out.reshape(batch, seq, hidden)


if __name__ == "__main__":
    # Small shapes consistent with the module (CANINE uses hidden=768 and
    # bottleneck_size in {32, 64, 256, 512}; kept small here).  seq chosen so
    # batch*seq = 200 is NOT a multiple of the row tile, exercising the
    # ragged-last-tile (no-padding) path.
    batch, seq, hidden, bottleneck = 2, 100, 128, 64

    key = jax.random.PRNGKey(0)
    kx, kwd, kbd, kwu, kbu = jax.random.split(key, 5)

    x = jax.random.normal(kx, (batch, seq, hidden), dtype=jnp.float32)

    # nn.Linear weights are (out, in) in PyTorch; stored here as (in, out).
    w_down = jax.random.normal(kwd, (hidden, bottleneck), jnp.float32) * 0.05
    b_down = jax.random.normal(kbd, (bottleneck,), jnp.float32) * 0.05
    w_up = jax.random.normal(kwu, (bottleneck, hidden), jnp.float32) * 0.05
    b_up = jax.random.normal(kbu, (hidden,), jnp.float32) * 0.05

    # 1) f32 path, adapter fused with the residual add that
    #    CanineLayerWithAdapter applies around it (adapter_loc='attention').
    y = adapter_forward(x, w_down, b_down, w_up, b_up,
                        add_residual=True, compute_dtype=jnp.float32)
    y = jax.block_until_ready(y)
    ref = x + jnp.maximum(x @ w_down + b_down, 0.0) @ w_up + b_up
    assert jnp.allclose(y, ref, atol=1e-4, rtol=1e-4), float(jnp.max(jnp.abs(y - ref)))

    # 2) Bare Adapter.forward (no residual), bf16-streamed activations and
    #    bf16 weights (the intended memory-bound fast path), f32 accumulation.
    xb = x.astype(jnp.bfloat16)
    y2 = adapter_forward(xb, w_down, b_down, w_up, b_up,
                         add_residual=False, compute_dtype=jnp.bfloat16)
    y2 = jax.block_until_ready(y2)
    xf = xb.astype(jnp.float32)
    wdf = w_down.astype(jnp.bfloat16).astype(jnp.float32)
    wuf = w_up.astype(jnp.bfloat16).astype(jnp.float32)
    ref2 = jnp.maximum(xf @ wdf + b_down, 0.0) @ wuf + b_up
    err2 = float(jnp.max(jnp.abs(y2.astype(jnp.float32) - ref2)))
    assert jnp.allclose(y2.astype(jnp.float32), ref2, atol=5e-2, rtol=5e-2), err2

    print("KERNEL_OK")
</pallas_src>

<mosaic_0001>
module attributes {stable_mosaic.version = 11 : i64} {
  func.func @_adapter_kernel(%arg0: i32, %arg1: memref<32x128xf32, #tpu.memory_space<vmem>>, %arg2: memref<128x64xf32, #tpu.memory_space<vmem>>, %arg3: memref<1x64xf32, #tpu.memory_space<vmem>>, %arg4: memref<64x128xf32, #tpu.memory_space<vmem>>, %arg5: memref<1x128xf32, #tpu.memory_space<vmem>>, %arg6: memref<32x128xf32, #tpu.memory_space<vmem>>) attributes {dimension_semantics = [#tpu.dimension_semantics<parallel>], iteration_bounds = array<i64: 7>, scalar_prefetch = 0 : i64, scratch_operands = 0 : i64, tpu.core_type = #tpu.core_type<tc>, window_params = [{transform_indices = @transform_0, window_bounds = array<i64: 32, 128>}, {pipeline_mode = #tpu.pipeline_mode<synchronous>, transform_indices = @transform_1, window_bounds = array<i64: 128, 64>}, {pipeline_mode = #tpu.pipeline_mode<synchronous>, transform_indices = @transform_2, window_bounds = array<i64: 1, 64>}, {pipeline_mode = #tpu.pipeline_mode<synchronous>, transform_indices = @transform_3, window_bounds = array<i64: 64, 128>}, {pipeline_mode = #tpu.pipeline_mode<synchronous>, transform_indices = @transform_4, window_bounds = array<i64: 1, 128>}, {transform_indices = @transform_5, window_bounds = array<i64: 32, 128>}]} {
    %c0 = arith.constant 0 : index
    %c0_0 = arith.constant 0 : index
    %0 = vector.load %arg1[%c0, %c0_0] : memref<32x128xf32, #tpu.memory_space<vmem>>, vector<32x128xf32>
    %c0_1 = arith.constant 0 : index
    %c0_2 = arith.constant 0 : index
    %1 = vector.load %arg2[%c0_1, %c0_2] : memref<128x64xf32, #tpu.memory_space<vmem>>, vector<128x64xf32>
    %cst = arith.constant dense<0.000000e+00> : vector<32x64xf32>
    %2 = tpu.matmul %0, %1, %cst {dimension_numbers = #tpu.dot_dimension_numbers<[1], [0], [0], [1], [0, 0, 1, 1], [], []>} : vector<32x128xf32>, vector<128x64xf32>, vector<32x64xf32> -> vector<32x64xf32>
    %c0_3 = arith.constant 0 : index
    %c0_4 = arith.constant 0 : index
    %3 = vector.load %arg3[%c0_3, %c0_4] : memref<1x64xf32, #tpu.memory_space<vmem>>, vector<1x64xf32>
    %4 = vector.broadcast %3 : vector<1x64xf32> to vector<32x64xf32>
    %5 = arith.addf %2, %4 : vector<32x64xf32>
    %cst_5 = arith.constant 0.000000e+00 : f32
    %6 = vector.broadcast %cst_5 : f32 to vector<32x64xf32>
    %7 = arith.maximumf %5, %6 : vector<32x64xf32>
    %c0_6 = arith.constant 0 : index
    %c0_7 = arith.constant 0 : index
    %8 = vector.load %arg4[%c0_6, %c0_7] : memref<64x128xf32, #tpu.memory_space<vmem>>, vector<64x128xf32>
    %cst_8 = arith.constant dense<0.000000e+00> : vector<32x128xf32>
    %9 = tpu.matmul %7, %8, %cst_8 {dimension_numbers = #tpu.dot_dimension_numbers<[1], [0], [0], [1], [0, 0, 1, 1], [], []>} : vector<32x64xf32>, vector<64x128xf32>, vector<32x128xf32> -> vector<32x128xf32>
    %c0_9 = arith.constant 0 : index
    %c0_10 = arith.constant 0 : index
    %10 = vector.load %arg5[%c0_9, %c0_10] : memref<1x128xf32, #tpu.memory_space<vmem>>, vector<1x128xf32>
    %11 = vector.broadcast %10 : vector<1x128xf32> to vector<32x128xf32>
    %12 = arith.addf %9, %11 : vector<32x128xf32>
    %c0_11 = arith.constant 0 : index
    %c0_12 = arith.constant 0 : index
    %13 = vector.load %arg1[%c0_11, %c0_12] : memref<32x128xf32, #tpu.memory_space<vmem>>, vector<32x128xf32>
    %14 = arith.addf %12, %13 : vector<32x128xf32>
    %c0_13 = arith.constant 0 : index
    %c0_14 = arith.constant 0 : index
    %15 = vector.load %arg6[%c0_13, %c0_14] : memref<32x128xf32, #tpu.memory_space<vmem>>, vector<32x128xf32>
    tpu.vector_store %arg6[%c0_13, %c0_14], %14 {strides = array<i32>} : memref<32x128xf32, #tpu.memory_space<vmem>>, vector<32x128xf32>,
    return
  }
  func.func @transform_0(%arg0: i32) -> (i32, i32) {
    %c0_i32 = arith.constant 0 : i32
    %c0_i32_0 = arith.constant 0 : i32
    return %arg0, %c0_i32 : i32, i32
  }
  func.func @transform_1(%arg0: i32) -> (i32, i32) {
    %c0_i32 = arith.constant 0 : i32
    %c0_i32_0 = arith.constant 0 : i32
    %c0_i32_1 = arith.constant 0 : i32
    return %c0_i32, %c0_i32_0 : i32, i32
  }
  func.func @transform_2(%arg0: i32) -> (i32, i32) {
    %c0_i32 = arith.constant 0 : i32
    %c0_i32_0 = arith.constant 0 : i32
    %c0_i32_1 = arith.constant 0 : i32
    return %c0_i32, %c0_i32_0 : i32, i32
  }
  func.func @transform_3(%arg0: i32) -> (i32, i32) {
    %c0_i32 = arith.constant 0 : i32
    %c0_i32_0 = arith.constant 0 : i32
    %c0_i32_1 = arith.constant 0 : i32
    return %c0_i32, %c0_i32_0 : i32, i32
  }
  func.func @transform_4(%arg0: i32) -> (i32, i32) {
    %c0_i32 = arith.constant 0 : i32
    %c0_i32_0 = arith.constant 0 : i32
    %c0_i32_1 = arith.constant 0 : i32
    return %c0_i32, %c0_i32_0 : i32, i32
  }
  func.func @transform_5(%arg0: i32) -> (i32, i32) {
    %c0_i32 = arith.constant 0 : i32
    %c0_i32_0 = arith.constant 0 : i32
    return %arg0, %c0_i32 : i32, i32
  }
}

</mosaic_0001>

<llo_original>
// kernel: tpu_custom_call.1
$region0: #{tpu_custom_call.1}
  #allocation0 [shape = 'u32[]', space=smem, size = 0x4, offset = 0x4, fixed_abs, tag = 'smem constant byte address 0x4 - core index']
  #allocation1 [shape = 'u32[144,128]{1,0:T(1,128)}', space=vmem, size = 0x12000, scoped, tag = 'internal scratch']
  %s0 = inlined_call_operand.hbm [shape: f32[200,128], index: 0, kind: input, shape index: {}]
  %s1 = inlined_call_operand.vmem [shape: f32[128,64], index: 1, kind: input, shape index: {}]
  %s2 = inlined_call_operand.vmem [shape: f32[1,64], index: 2, kind: input, shape index: {}]
  %s3 = inlined_call_operand.vmem [shape: f32[64,128], index: 3, kind: input, shape index: {}]
  %s4 = inlined_call_operand.vmem [shape: f32[1,128], index: 4, kind: input, shape index: {}]
  %s5 = inlined_call_operand.hbm [shape: f32[200,128], index: 5, kind: output, shape index: {}]
  %s6 = sld [smem:[#allocation0]]
  $region57: #{tpu_custom_call.1} parent=0
    _
  %s8 = ssub.s32 1, %s6
  %s9 = scalar_select 0, %s8, %s6
  $region1: #{tpu_custom_call.1} parent=0
    #allocation2 [shape = 'u8[32768]{0}', space=vmem, size = 0x8000, scoped, tag = 'input window, operand 0']
    #allocation3 [shape = 's32[2]{0}', space=sflag, size = 0x8, scoped, tag = 'scoped memory for tpu_custom_call.1']
    #allocation4 [shape = 's32[2]{0}', space=sflag, size = 0x8, scoped, tag = 'scoped memory for tpu_custom_call.1']
    #allocation5 [shape = 'u8[32768]{0}', space=vmem, size = 0x8000, scoped, tag = 'output window, operand 0']
    %10 = vsyncpa [#allocation3], 0
    %s11 = scalar_lea.sflag [#allocation3], 1
    %12 = vsyncpa %s11, 0
    %13 = vsyncpa [#allocation4], 0
    %s14 = scalar_lea.sflag [#allocation4], 1
    %15 = vsyncpa %s14, 0
    loop: start=0, step=1, limit=9
    $region2: #{tpu_custom_call.1} parent=1 // loop_pre_header
      _
    $region3: #{tpu_custom_call.1} parent=1 // loop_header
      %s17 = sphi 0, %s21
      %p18 = scmp.ge.s32.totalorder %s17, 9
      %s27 = sphi 0, %s29
      %s30 = sphi 0, %s27
      %s31 = sphi 0, %s30
      %s47 = sphi 0, %s31
      %s51 = sphi 0, %s51
      %s53 = sphi 0, %s51
      %s54 = sphi 0, %s53
      %s68 = sphi 0, %s54
      %s72 = sphi 0, %s72
      %s74 = sphi 0, %s72
      %s75 = sphi 0, %s74
      %s89 = sphi 0, %s75
      %s93 = sphi 0, %s93
      %s95 = sphi 0, %s93
      %s96 = sphi 0, %s95
      %s110 = sphi 0, %s96
      %s114 = sphi 0, %s114
      %s116 = sphi 0, %s114
      %s117 = sphi 0, %s116
      %s131 = sphi 0, %s117
      %s137 = sphi 0, %s139
      %s140 = sphi 0, %s137
      %s141 = sphi 0, %s140
      %s157 = sphi 0, %s141
    $region4: #{tpu_custom_call.1} parent=1 // loop_header_branch
      %20 = sbr.rel (%p18) target = $region8
    $region5: #{tpu_custom_call.1} parent=1 // loop_body
      %s22 = ssub.s32 %s17, 1
      %s23 = ssub.s32 %s17, 2
      %s24 = sadd.s32 %s17, 1
      %s25 = ssub.s32 %s17, %s24
      %p26 = scmp.eq.s32.totalorder %s25, 0
      %s28 = sadd.s32 %s27, 1
      %s29 = scalar_select %p26, %s27, %s28
      %p32 = pneg %p26
      %p33 = scmp.eq.s32.totalorder %s17, 6
      %p34 = por %p32, %p33
      %p35 = scmp.ne.s32.totalorder %s27, %s30
      %p36 = scmp.eq.s32.totalorder %s17, 0
      %p37 = por %p35, %p36
      %p38 = scmp.ne.s32.totalorder %s27, %s30
      %p39 = scmp.eq.s32.totalorder %s22, 6
      %p40 = por %p38, %p39
      %p41 = scmp.ne.s32.totalorder %s30, %s31
      %p42 = scmp.eq.s32.totalorder %s22, 0
      %p43 = por %p41, %p42
      %p44 = scmp.ne.s32.totalorder %s30, %s31
      %p45 = scmp.eq.s32.totalorder %s23, 6
      %p46 = por %p44, %p45
      %p48 = scmp.ne.s32.totalorder %s31, %s47
      %p49 = scmp.eq.s32.totalorder %s23, 0
      %p50 = por %p48, %p49
      %s52 = sadd.s32 %s51, 1
      %p55 = scmp.eq.s32.totalorder %s17, 6
      %p56 = scmp.ne.s32.totalorder %s51, %s53
      %p57 = scmp.eq.s32.totalorder %s17, 0
      %p58 = por %p56, %p57
      %p59 = scmp.ne.s32.totalorder %s51, %s53
      %p60 = scmp.eq.s32.totalorder %s22, 6
      %p61 = por %p59, %p60
      %p62 = scmp.ne.s32.totalorder %s53, %s54
      %p63 = scmp.eq.s32.totalorder %s22, 0
      %p64 = por %p62, %p63
      %p65 = scmp.ne.s32.totalorder %s53, %s54
      %p66 = scmp.eq.s32.totalorder %s23, 6
      %p67 = por %p65, %p66
      %p69 = scmp.ne.s32.totalorder %s54, %s68
      %p70 = scmp.eq.s32.totalorder %s23, 0
      %p71 = por %p69, %p70
      %s73 = sadd.s32 %s72, 1
      %p76 = scmp.eq.s32.totalorder %s17, 6
      %p77 = scmp.ne.s32.totalorder %s72, %s74
      %p78 = scmp.eq.s32.totalorder %s17, 0
      %p79 = por %p77, %p78
      %p80 = scmp.ne.s32.totalorder %s72, %s74
      %p81 = scmp.eq.s32.totalorder %s22, 6
      %p82 = por %p80, %p81
      %p83 = scmp.ne.s32.totalorder %s74, %s75
      %p84 = scmp.eq.s32.totalorder %s22, 0
      %p85 = por %p83, %p84
      %p86 = scmp.ne.s32.totalorder %s74, %s75
      %p87 = scmp.eq.s32.totalorder %s23, 6
      %p88 = por %p86, %p87
      %p90 = scmp.ne.s32.totalorder %s75, %s89
      %p91 = scmp.eq.s32.totalorder %s23, 0
      %p92 = por %p90, %p91
      %s94 = sadd.s32 %s93, 1
      %p97 = scmp.eq.s32.totalorder %s17, 6
      %p98 = scmp.ne.s32.totalorder %s93, %s95
      %p99 = scmp.eq.s32.totalorder %s17, 0
      %p100 = por %p98, %p99
      %p101 = scmp.ne.s32.totalorder %s93, %s95
      %p102 = scmp.eq.s32.totalorder %s22, 6
      %p103 = por %p101, %p102
      %p104 = scmp.ne.s32.totalorder %s95, %s96
      %p105 = scmp.eq.s32.totalorder %s22, 0
      %p106 = por %p104, %p105
      %p107 = scmp.ne.s32.totalorder %s95, %s96
      %p108 = scmp.eq.s32.totalorder %s23, 6
      %p109 = por %p107, %p108
      %p111 = scmp.ne.s32.totalorder %s96, %s110
      %p112 = scmp.eq.s32.totalorder %s23, 0
      %p113 = por %p111, %p112
      %s115 = sadd.s32 %s114, 1
      %p118 = scmp.eq.s32.totalorder %s17, 6
      %p119 = scmp.ne.s32.totalorder %s114, %s116
      %p120 = scmp.eq.s32.totalorder %s17, 0
      %p121 = por %p119, %p120
      %p122 = scmp.ne.s32.totalorder %s114, %s116
      %p123 = scmp.eq.s32.totalorder %s22, 6
      %p124 = por %p122, %p123
      %p125 = scmp.ne.s32.totalorder %s116, %s117
      %p126 = scmp.eq.s32.totalorder %s22, 0
      %p127 = por %p125, %p126
      %p128 = scmp.ne.s32.totalorder %s116, %s117
      %p129 = scmp.eq.s32.totalorder %s23, 6
      %p130 = por %p128, %p129
      %p132 = scmp.ne.s32.totalorder %s117, %s131
      %p133 = scmp.eq.s32.totalorder %s23, 0
      %p134 = por %p132, %p133
      %s135 = ssub.s32 %s17, %s24
      %p136 = scmp.eq.s32.totalorder %s135, 0
      %s138 = sadd.s32 %s137, 1
      %s139 = scalar_select %p136, %s137, %s138
      %p142 = pneg %p136
      %p143 = scmp.eq.s32.totalorder %s17, 6
      %p144 = por %p142, %p143
      %p145 = scmp.ne.s32.totalorder %s137, %s140
      %p146 = scmp.eq.s32.totalorder %s17, 0
      %p147 = por %p145, %p146
      %p148 = scmp.ne.s32.totalorder %s137, %s140
      %p149 = scmp.eq.s32.totalorder %s22, 6
      %p150 = por %p148, %p149
      %p151 = scmp.ne.s32.totalorder %s140, %s141
      %p152 = scmp.eq.s32.totalorder %s22, 0
      %p153 = por %p151, %p152
      %p154 = scmp.ne.s32.totalorder %s140, %s141
      %p155 = scmp.eq.s32.totalorder %s23, 6
      %p156 = por %p154, %p155
      %p158 = scmp.ne.s32.totalorder %s141, %s157
      %p159 = scmp.eq.s32.totalorder %s23, 0
      %p160 = por %p158, %p159
      %p161 = scmp.le.s32.totalorder 1, %s17
      %p162 = scmp.lt.s32.totalorder %s17, 8
      %p163 = pnand %p161, %p162
      %p164 = pneg %p163
      // Predicated region
      $region9: #{tpu_custom_call.1} parent=5 // pred_check
        _
      $region10: #{tpu_custom_call.1} parent=5 // pred_check_branch
        %166 = sbr.rel (%p163) target = $region12
      $region11: #{tpu_custom_call.1} parent=5 // pred_region
        %s167 = ssub.s32 %s17, 1
        // Predicated region
        $region13: #{tpu_custom_call.1} parent=11 // pred_check
          %p168 = pneg %p64
        $region14: #{tpu_custom_call.1} parent=11 // pred_check_branch
          %170 = sbr.rel (%p168) target = $region16
        $region15: #{tpu_custom_call.1} parent=11 // pred_region
          _
        $region16: #{tpu_custom_call.1} parent=11 // pred_fallthru
          _
        // Predicated region
        $region17: #{tpu_custom_call.1} parent=11 // pred_check
          %p171 = pneg %p85
        $region18: #{tpu_custom_call.1} parent=11 // pred_check_branch
          %173 = sbr.rel (%p171) target = $region20
        $region19: #{tpu_custom_call.1} parent=11 // pred_region
          _
        $region20: #{tpu_custom_call.1} parent=11 // pred_fallthru
          _
        // Predicated region
        $region21: #{tpu_custom_call.1} parent=11 // pred_check
          %p174 = pneg %p106
        $region22: #{tpu_custom_call.1} parent=11 // pred_check_branch
          %176 = sbr.rel (%p174) target = $region24
        $region23: #{tpu_custom_call.1} parent=11 // pred_region
          _
        $region24: #{tpu_custom_call.1} parent=11 // pred_fallthru
          _
        // Predicated region
        $region25: #{tpu_custom_call.1} parent=11 // pred_check
          %p177 = pneg %p127
        $region26: #{tpu_custom_call.1} parent=11 // pred_check_branch
          %179 = sbr.rel (%p177) target = $region28
        $region27: #{tpu_custom_call.1} parent=11 // pred_region
          _
        $region28: #{tpu_custom_call.1} parent=11 // pred_fallthru
          _
      $region12: #{tpu_custom_call.1} parent=5 // pred_fallthru
        _
      %p180 = scmp.lt.s32.totalorder %s17, 7
      // Predicated region
      $region29: #{tpu_custom_call.1} parent=5 // pred_check
        %p181 = pneg %p180
      $region30: #{tpu_custom_call.1} parent=5 // pred_check_branch
        %183 = sbr.rel (%p181) target = $region32
      $region31: #{tpu_custom_call.1} parent=5 // pred_region
        // Predicated region
        $region33: #{tpu_custom_call.1} parent=31 // pred_check
          %p184 = pneg %p37
        $region34: #{tpu_custom_call.1} parent=31 // pred_check_branch
          %186 = sbr.rel (%p184) target = $region36
        $region35: #{tpu_custom_call.1} parent=31 // pred_region
          %s187 = sand.u32 %s27, 1
          %s188 = scalar_lea.sflag [#allocation3], %s187
          %s189 = sand.u32 %s27, 1
          %s190 = smul.addr %s189, 32
          %s191 = scalar_lea.vmem [#allocation2], %s190
          %s192 = smul.u32 4, %s17
          %s193 = ssub.s32 25, %s192
          %p194 = scmp.lt.s32.totalorder %s193, 4
          %s195 = scalar_select %p194, %s193, 4
          %s196 = smul.u32 128, %s195
          %s198 = ssub.s32 512, %s196
          %199 = vsyncadd %s188, %s198
          %p200 = scmp.ne.s32.totalorder 0, %s196
          %s201 = smul.addr %s192, 128
          %s202 = scalar_lea.hbm %s0, %s201
          %s203 = smul.u32 8, %s195
          %s204 = sshll.u32 %s191, 4
          %s205 = int_to_ptr.vmem [resolvable:$true] %s204
          %s206 = sshll.u32 %s203, 4
          %210 = dma.hbm_to_vmem [thread:$0]  (%p200), %s202, %s206, %s205, %s188, 128, 128, 8
        $region36: #{tpu_custom_call.1} parent=31 // pred_fallthru
          _
      $region32: #{tpu_custom_call.1} parent=5 // pred_fallthru
        _
      %p211 = scmp.le.s32.totalorder 1, %s17
      %p212 = scmp.lt.s32.totalorder %s17, 8
      %p213 = pnand %p211, %p212
      %p214 = pneg %p213
      // Predicated region
      $region37: #{tpu_custom_call.1} parent=5 // pred_check
        _
      $region38: #{tpu_custom_call.1} parent=5 // pred_check_branch
        %216 = sbr.rel (%p213) target = $region40
      $region39: #{tpu_custom_call.1} parent=5 // pred_region
        %s217 = ssub.s32 %s17, 1
        %s218 = sand.u32 %s30, 1
        %s219 = scalar_lea.sflag [#allocation3], %s218
        %s220 = sand.u32 %s30, 1
        %s221 = smul.addr %s220, 32
        %s222 = scalar_lea.vmem [#allocation2], %s221
        // Predicated region
        $region41: #{tpu_custom_call.1} parent=39 // pred_check
          %p223 = pneg %p43
        $region42: #{tpu_custom_call.1} parent=39 // pred_check_branch
          %225 = sbr.rel (%p223) target = $region44
        $region43: #{tpu_custom_call.1} parent=39 // pred_region
          %226 = dma.done %s219, 512
        $region44: #{tpu_custom_call.1} parent=39 // pred_fallthru
          _
        %s227 = sand.u32 %s30, 1
        %s228 = scalar_lea.sflag [#allocation3], %s227
        %s229 = sand.u32 %s30, 1
        %s230 = smul.addr %s229, 32
        %s231 = scalar_lea.vmem [#allocation2], %s230
        %p232 = pneg %p43
        %p233 = pneg %p40
        %p234 = pneg %p64
        %p235 = pneg %p61
        %p236 = pneg %p85
        %p237 = pneg %p82
        %p238 = pneg %p106
        %p239 = pneg %p103
        %p240 = pneg %p127
        %p241 = pneg %p124
        %p242 = pneg %p153
        %p243 = pneg %p150
        %s244 = sand.u32 %s140, 1
        %s245 = scalar_lea.sflag [#allocation4], %s244
        %s246 = sand.u32 %s140, 1
        %s247 = smul.addr %s246, 32
        %s248 = scalar_lea.vmem [#allocation5], %s247
        %s249 = smul.u32 4, %s22
        %s250 = ssub.s32 25, %s249
        %p251 = scmp.lt.s32.totalorder %s250, 4
        %s252 = scalar_select %p251, %s250, 4
        %s253 = smul.u32 128, %s252
        %s254 = smul.u32 4, %s22
        %s255 = ssub.s32 25, %s254
        %p256 = scmp.lt.s32.totalorder %s255, 4
        %s257 = scalar_select %p256, %s255, 4
        %s258 = smul.u32 128, %s257
        %v259 = vld [vmem:[%s222] sm:$0xff]
        %v260 = vld [vmem:[%s222 + $0x8] sm:$0xff]
        %v261 = vld [vmem:[%s222 + $0x10] sm:$0xff]
        %v262 = vld [vmem:[%s222 + $0x18] sm:$0xff]
        %v263 = vld [vmem:[%s1] sm:$0xff]
        %v264 = vld [vmem:[%s1 + $0x8] sm:$0xff]
        %v265 = vld [vmem:[%s1 + $0x10] sm:$0xff]
        %v266 = vld [vmem:[%s1 + $0x18] sm:$0xff]
        %v267 = vld [vmem:[%s1 + $0x20] sm:$0xff]
        %v268 = vld [vmem:[%s1 + $0x28] sm:$0xff]
        %v269 = vld [vmem:[%s1 + $0x30] sm:$0xff]
        %v270 = vld [vmem:[%s1 + $0x38] sm:$0xff]
        %v271 = vld [vmem:[%s1 + $0x40] sm:$0xff]
        %v272 = vld [vmem:[%s1 + $0x48] sm:$0xff]
        %v273 = vld [vmem:[%s1 + $0x50] sm:$0xff]
        %v274 = vld [vmem:[%s1 + $0x58] sm:$0xff]
        %v275 = vld [vmem:[%s1 + $0x60] sm:$0xff]
        %v276 = vld [vmem:[%s1 + $0x68] sm:$0xff]
        %v277 = vld [vmem:[%s1 + $0x70] sm:$0xff]
        %v278 = vld [vmem:[%s1 + $0x78] sm:$0xff]
        %v279 = vld [vmem:[%s2] sm:$0x1]
        %v281 = vlaneseq
        %v282 = vshrl.u32 %v281, 7
        %v283 = vsub.s32 0, %v282
        %v284 = vrot.slane %v279, %v283
        %286 = vmatprep.subr.mxu0 0.0
        %287 = vmatpush1.msra.mxu0 %v263
        %288 = vmatprep.subr.mxu0 0.0
        %289 = vmatpush1.msra.mxu0 %v264
        %290 = vmatprep.subr.mxu0 0.0
        %291 = vmatpush1.msra.mxu0 %v265
        %292 = vmatprep.subr.mxu0 0.0
        %293 = vmatpush1.msra.mxu0 %v266
        %294 = vmatprep.subr.mxu0 0.0
        %295 = vmatpush1.msra.mxu0 %v267
        %296 = vmatprep.subr.mxu0 0.0
        %297 = vmatpush1.msra.mxu0 %v268
        %298 = vmatprep.subr.mxu0 0.0
        %299 = vmatpush1.msra.mxu0 %v269
        %300 = vmatprep.subr.mxu0 0.0
        %301 = vmatpush1.msra.mxu0 %v270
        %302 = vmatprep.subr.mxu0 0.0
        %303 = vmatpush1.msra.mxu0 %v271
        %304 = vmatprep.subr.mxu0 0.0
        %305 = vmatpush1.msra.mxu0 %v272
        %306 = vmatprep.subr.mxu0 0.0
        %307 = vmatpush1.msra.mxu0 %v273
        %308 = vmatprep.subr.mxu0 0.0
        %309 = vmatpush1.msra.mxu0 %v274
        %310 = vmatprep.subr.mxu0 0.0
        %311 = vmatpush1.msra.mxu0 %v275
        %312 = vmatprep.subr.mxu0 0.0
        %313 = vmatpush1.msra.mxu0 %v276
        %314 = vmatprep.subr.mxu0 0.0
        %315 = vmatpush1.msra.mxu0 %v277
        %316 = vmatprep.subr.mxu0 0.0
        %317 = vmatpush1.msra.mxu0 %v278
        %318 = vmatprep.subr.mxu0 0.0
        %319 = vmatpush1.msra.mxu0 0.0
        %320 = vmatprep.subr.mxu0 0.0
        %321 = vmatpush1.msra.mxu0 0.0
        %322 = vmatprep.subr.mxu0 0.0
        %323 = vmatpush1.msra.mxu0 0.0
        %324 = vmatprep.subr.mxu0 0.0
        %325 = vmatpush1.msra.mxu0 0.0
        %326 = vmatprep.subr.mxu0 0.0
        %327 = vmatpush1.msra.mxu0 0.0
        %328 = vmatprep.subr.mxu0 0.0
        %329 = vmatpush1.msra.mxu0 0.0
        %330 = vmatprep.subr.mxu0 0.0
        %331 = vmatpush1.msra.mxu0 0.0
        %332 = vmatprep.subr.mxu0 0.0
        %333 = vmatpush1.msra.mxu0 0.0
        %334 = vmatprep.subr.mxu0 0.0
        %335 = vmatpush1.msra.mxu0 0.0
        %336 = vmatprep.subr.mxu0 0.0
        %337 = vmatpush1.msra.mxu0 0.0
        %338 = vmatprep.subr.mxu0 0.0
        %339 = vmatpush1.msra.mxu0 0.0
        %340 = vmatprep.subr.mxu0 0.0
        %341 = vmatpush1.msra.mxu0 0.0
        %342 = vmatprep.subr.mxu0 0.0
        %343 = vmatpush1.msra.mxu0 0.0
        %344 = vmatprep.subr.mxu0 0.0
        %345 = vmatpush1.msra.mxu0 0.0
        %346 = vmatprep.subr.mxu0 0.0
        %347 = vmatpush1.msra.mxu0 0.0
        %348 = vmatprep.subr.mxu0 0.0
        %349 = vmatpush1.msra.mxu0 0.0
        %350 = vmatprep.mubr.f32.mxu0 0.0
        %351 = vmatmul.mubr.f32.gmra.mrb[0].mxu0 %v259
        %v352 = vpop.f32.mrb[0].mxu0
        %v353 = vadd.f32 %v284, %v352
        %v354 = vpop.f32.mrb[0].mxu0
        %355 = vmatprep.mubr.f32.mxu0 0.0
        %356 = vmatmul.mubr.f32.gmra.mrb[0].mxu0 %v260
        %v357 = vpop.f32.mrb[0].mxu0
        %v358 = vadd.f32 %v284, %v357
        %v359 = vpop.f32.mrb[0].mxu0
        %360 = vmatprep.mubr.f32.mxu0 0.0
        %361 = vmatmul.mubr.f32.gmra.mrb[0].mxu0 %v261
        %v362 = vpop.f32.mrb[0].mxu0
        %v363 = vadd.f32 %v284, %v362
        %v364 = vpop.f32.mrb[0].mxu0
        %365 = vmatprep.mubr.f32.mxu0 0.0
        %366 = vmatmul.mubr.f32.gmra.mrb[0].mxu0 %v262
        %v367 = vpop.f32.mrb[0].mxu0
        %v368 = vadd.f32 %v284, %v367
        %v369 = vpop.f32.mrb[0].mxu0
        %370 = vdwg.mxu0
        %v371 = vmax.f32 %v353, 0.0
        %v372 = vmax.f32 %v358, 0.0
        %v373 = vmax.f32 %v363, 0.0
        %v374 = vmax.f32 %v368, 0.0
        %v375 = vld [vmem:[%s3] sm:$0xff]
        %v376 = vld [vmem:[%s3 + $0x8] sm:$0xff]
        %v377 = vld [vmem:[%s3 + $0x10] sm:$0xff]
        %v378 = vld [vmem:[%s3 + $0x18] sm:$0xff]
        %v379 = vld [vmem:[%s3 + $0x20] sm:$0xff]
        %v380 = vld [vmem:[%s3 + $0x28] sm:$0xff]
        %v381 = vld [vmem:[%s3 + $0x30] sm:$0xff]
        %v382 = vld [vmem:[%s3 + $0x38] sm:$0xff]
        %v383 = vld [vmem:[%s4] sm:$0x1]
        %v385 = vlaneseq
        %v386 = vshrl.u32 %v385, 7
        %v387 = vsub.s32 0, %v386
        %v388 = vrot.slane %v383, %v387
        %vm390 = vcmask 523264
        %v392 = vsel %vm390, %v371, 0
        %v395 = vsel %vm390, %v372, 0
        %v398 = vsel %vm390, %v373, 0
        %v401 = vsel %vm390, %v374, 0
        %403 = vmatprep.subr.mxu0 0.0
        %404 = vmatpush1.msra.mxu0 %v375
        %405 = vmatprep.subr.mxu0 0.0
        %406 = vmatpush1.msra.mxu0 %v376
        %407 = vmatprep.subr.mxu0 0.0
        %408 = vmatpush1.msra.mxu0 %v377
        %409 = vmatprep.subr.mxu0 0.0
        %410 = vmatpush1.msra.mxu0 %v378
        %411 = vmatprep.subr.mxu0 0.0
        %412 = vmatpush1.msra.mxu0 %v379
        %413 = vmatprep.subr.mxu0 0.0
        %414 = vmatpush1.msra.mxu0 %v380
        %415 = vmatprep.subr.mxu0 0.0
        %416 = vmatpush1.msra.mxu0 %v381
        %417 = vmatprep.subr.mxu0 0.0
        %418 = vmatpush1.msra.mxu0 %v382
        %419 = vmatprep.subr.mxu0 0.0
        %420 = vmatpush1.msra.mxu0 0.0
        %421 = vmatprep.subr.mxu0 0.0
        %422 = vmatpush1.msra.mxu0 0.0
        %423 = vmatprep.subr.mxu0 0.0
        %424 = vmatpush1.msra.mxu0 0.0
        %425 = vmatprep.subr.mxu0 0.0
        %426 = vmatpush1.msra.mxu0 0.0
        %427 = vmatprep.subr.mxu0 0.0
        %428 = vmatpush1.msra.mxu0 0.0
        %429 = vmatprep.subr.mxu0 0.0
        %430 = vmatpush1.msra.mxu0 0.0
        %431 = vmatprep.subr.mxu0 0.0
        %432 = vmatpush1.msra.mxu0 0.0
        %433 = vmatprep.subr.mxu0 0.0
        %434 = vmatpush1.msra.mxu0 0.0
        %435 = vmatprep.subr.mxu0 0.0
        %436 = vmatpush1.msra.mxu0 0.0
        %437 = vmatprep.subr.mxu0 0.0
        %438 = vmatpush1.msra.mxu0 0.0
        %439 = vmatprep.subr.mxu0 0.0
        %440 = vmatpush1.msra.mxu0 0.0
        %441 = vmatprep.subr.mxu0 0.0
        %442 = vmatpush1.msra.mxu0 0.0
        %443 = vmatprep.subr.mxu0 0.0
        %444 = vmatpush1.msra.mxu0 0.0
        %445 = vmatprep.subr.mxu0 0.0
        %446 = vmatpush1.msra.mxu0 0.0
        %447 = vmatprep.subr.mxu0 0.0
        %448 = vmatpush1.msra.mxu0 0.0
        %449 = vmatprep.subr.mxu0 0.0
        %450 = vmatpush1.msra.mxu0 0.0
        %451 = vmatprep.subr.mxu0 0.0
        %452 = vmatpush1.msra.mxu0 0.0
        %453 = vmatprep.subr.mxu0 0.0
        %454 = vmatpush1.msra.mxu0 0.0
        %455 = vmatprep.subr.mxu0 0.0
        %456 = vmatpush1.msra.mxu0 0.0
        %457 = vmatprep.subr.mxu0 0.0
        %458 = vmatpush1.msra.mxu0 0.0
        %459 = vmatprep.subr.mxu0 0.0
        %460 = vmatpush1.msra.mxu0 0.0
        %461 = vmatprep.subr.mxu0 0.0
        %462 = vmatpush1.msra.mxu0 0.0
        %463 = vmatprep.subr.mxu0 0.0
        %464 = vmatpush1.msra.mxu0 0.0
        %465 = vmatprep.subr.mxu0 0.0
        %466 = vmatpush1.msra.mxu0 0.0
        %467 = vmatprep.mubr.f32.mxu0 0.0
        %468 = vmatmul.mubr.f32.gmra.mrb[0].mxu0 %v392
        %v469 = vpop.f32.mrb[0].mxu0
        %v470 = vadd.f32 %v388, %v469
        %v471 = vpop.f32.mrb[0].mxu0
        %472 = vmatprep.mubr.f32.mxu0 0.0
        %473 = vmatmul.mubr.f32.gmra.mrb[0].mxu0 %v395
        %v474 = vpop.f32.mrb[0].mxu0
        %v475 = vadd.f32 %v388, %v474
        %v476 = vpop.f32.mrb[0].mxu0
        %477 = vmatprep.mubr.f32.mxu0 0.0
        %478 = vmatmul.mubr.f32.gmra.mrb[0].mxu0 %v398
        %v479 = vpop.f32.mrb[0].mxu0
        %v480 = vadd.f32 %v388, %v479
        %v481 = vpop.f32.mrb[0].mxu0
        %482 = vmatprep.mubr.f32.mxu0 0.0
        %483 = vmatmul.mubr.f32.gmra.mrb[0].mxu0 %v401
        %v484 = vpop.f32.mrb[0].mxu0
        %v485 = vadd.f32 %v388, %v484
        %v486 = vpop.f32.mrb[0].mxu0
        %487 = vdwg.mxu0
        %v488 = vadd.f32 %v470, %v259
        %v489 = vadd.f32 %v475, %v260
        %v490 = vadd.f32 %v480, %v261
        %v491 = vadd.f32 %v485, %v262
        %492 = vst [vmem:[%s248] sm:$0xff] %v488
        %493 = vst [vmem:[%s248 + $0x8] sm:$0xff] %v489
        %494 = vst [vmem:[%s248 + $0x10] sm:$0xff] %v490
        %495 = vst [vmem:[%s248 + $0x18] sm:$0xff] %v491
        %s496 = sand.u32 %s140, 1
        %s497 = scalar_lea.sflag [#allocation4], %s496
        %s498 = sand.u32 %s140, 1
        %s499 = smul.addr %s498, 32
        %s500 = scalar_lea.vmem [#allocation5], %s499
        // Predicated region
        $region45: #{tpu_custom_call.1} parent=39 // pred_check
          %p501 = pneg %p150
        $region46: #{tpu_custom_call.1} parent=39 // pred_check_branch
          %503 = sbr.rel (%p501) target = $region48
        $region47: #{tpu_custom_call.1} parent=39 // pred_region
          %s504 = smul.u32 4, %s22
          %s505 = ssub.s32 25, %s504
          %p506 = scmp.lt.s32.totalorder %s505, 4
          %s507 = scalar_select %p506, %s505, 4
          %s508 = smul.u32 128, %s507
          %s510 = ssub.s32 512, %s508
          %511 = vsyncadd %s497, %s510
          %p512 = scmp.ne.s32.totalorder 0, %s508
          %s513 = smul.addr %s504, 128
          %s514 = scalar_lea.hbm %s5, %s513
          %s515 = smul.u32 8, %s507
          %s516 = sshll.u32 %s500, 4
          %s517 = int_to_ptr.vmem [resolvable:$true] %s516
          %s518 = sshll.u32 %s515, 4
          %522 = dma.vmem_to_hbm [thread:$0]  (%p512), %s517, %s518, %s514, %s497, 128, 128, 8
        $region48: #{tpu_custom_call.1} parent=39 // pred_fallthru
          _
      $region40: #{tpu_custom_call.1} parent=5 // pred_fallthru
        _
      %p523 = scmp.le.s32.totalorder 2, %s17
      // Predicated region
      $region49: #{tpu_custom_call.1} parent=5 // pred_check
        %p524 = pneg %p523
      $region50: #{tpu_custom_call.1} parent=5 // pred_check_branch
        %526 = sbr.rel (%p524) target = $region52
      $region51: #{tpu_custom_call.1} parent=5 // pred_region
        %s527 = ssub.s32 %s17, 2
        // Predicated region
        $region53: #{tpu_custom_call.1} parent=51 // pred_check
          %p528 = pneg %p156
        $region54: #{tpu_custom_call.1} parent=51 // pred_check_branch
          %530 = sbr.rel (%p528) target = $region56
        $region55: #{tpu_custom_call.1} parent=51 // pred_region
          %s531 = sand.u32 %s141, 1
          %s532 = scalar_lea.sflag [#allocation4], %s531
          %s533 = sand.u32 %s141, 1
          %s534 = smul.addr %s533, 32
          %s535 = scalar_lea.vmem [#allocation5], %s534
          %536 = dma.done %s532, 512
        $region56: #{tpu_custom_call.1} parent=51 // pred_fallthru
          _
      $region52: #{tpu_custom_call.1} parent=5 // pred_fallthru
        _
    $region6: #{tpu_custom_call.1} parent=1 // loop_footer
      %s21 = sadd.s32 1, %s17
    $region7: #{tpu_custom_call.1} parent=1 // loop_footer_branch
      %16 = sbr.rel target = $region3
    $region8: #{tpu_custom_call.1} parent=1 // loop_exit
      _
    %537 = vsyncpa [#allocation3], 1
    %s538 = scalar_lea.sflag [#allocation3], 1
    %539 = vsyncpa %s538, 1
    %540 = vsyncpa [#allocation4], 1
    %s541 = scalar_lea.sflag [#allocation4], 1
    %542 = vsyncpa %s541, 1

</llo_original>
